<compile_context>
chip_gen: v6e
topology: v6e:2x2x1
jax: 0.10.0
libtpu: 0.0.40
codegen_flags: <defaults>
</compile_context>

<pallas_src>
import functools

import jax
import jax.numpy as jnp
from jax.experimental import pallas as pl
from jax.experimental.pallas import tpu as pltpu


# ----------------------------------------------------------------------------
# helpers
# ----------------------------------------------------------------------------
def _round_up(x, m):
    return ((x + m - 1) // m) * m


def _pick_group_size(num_heads, head_dim):
    """Heads per grid step: aim for a wide group but keep >=2 groups so the
    (parallel) group axis can be sharded across both v7x TensorCores."""
    g = max(1, min(num_heads, 256 // max(head_dim, 1)))
    if num_heads >= 2:
        g = min(g, max(1, num_heads // 2))
    while num_heads % g:
        g -= 1
    return g


def _vmem_limit_bytes():
    """Per-generation VMEM limit with headroom (None -> leave Mosaic default)."""
    try:
        info = pltpu.get_tpu_info()
        cap = int(getattr(info, "vmem_capacity_bytes"))
    except Exception:
        return None
    if cap <= 0:
        return None
    # keep headroom for Mosaic internal scratch / semaphores (critical on the
    # 64 MiB v7x parts); use most of the 128 MiB v5e/v6e parts.
    return int(min(cap - 12 * 1024 * 1024, (cap * 4) // 5))


def _compiler_params():
    cp_cls = (getattr(pltpu, "CompilerParams", None)
              or getattr(pltpu, "TPUCompilerParams", None))
    if cp_cls is None:
        return None
    kwargs = dict(dimension_semantics=("parallel", "parallel", "arbitrary"))
    limit = _vmem_limit_bytes()
    if limit:
        kwargs["vmem_limit_bytes"] = int(limit)
    try:
        return cp_cls(**kwargs)
    except TypeError:
        return cp_cls(dimension_semantics=("parallel", "parallel", "arbitrary"))


# ----------------------------------------------------------------------------
# kernel: flash attention over S tiles for one (batch, head-group)
# ----------------------------------------------------------------------------
def _flash_attention_kernel(*refs, group, kv_len, s_blk, n_s_blocks,
                            has_mask, want_weights, needs_col_mask):
    it = iter(refs)
    q_ref = next(it)                                  # (G, Tp, hd)  bf16
    k_ref = next(it)                                  # (G, Sb, hd)  bf16
    v_ref = next(it)                                  # (G, Sb, hd)  bf16
    mask_ref = next(it) if has_mask else None         # (G, Tp, Sb)  bf16
    wo_ref = next(it)                                 # (G, hd, E)   bf16
    out_ref = next(it)                                # (Tp, E)      f32
    attnw_ref = next(it) if want_weights else None    # (G, Tp, Sp)  bf16
    m_ref = next(it)                                  # (G, Tp, 1)   f32
    l_ref = next(it)                                  # (G, Tp, 1)   f32
    acc_ref = next(it)                                # (G, Tp, hd)  f32

    f32 = jnp.float32
    bf16 = jnp.bfloat16
    s = pl.program_id(2)

    @pl.when(s == 0)
    def _():
        m_ref[...] = jnp.full(m_ref.shape, -1e30, f32)
        l_ref[...] = jnp.zeros(l_ref.shape, f32)
        acc_ref[...] = jnp.zeros(acc_ref.shape, f32)

    q = q_ref[...]
    k = k_ref[...]
    v = v_ref[...]

    # (G, Tp, Sb) logits in f32, bf16 MXU operands.
    logits = jnp.einsum("gtd,gsd->gts", q, k, preferred_element_type=f32)
    if has_mask:
        logits = logits + mask_ref[...].astype(f32)
    if needs_col_mask:
        col = jax.lax.broadcasted_iota(jnp.int32, logits.shape, 2) + s * s_blk
        logits = jnp.where(col < kv_len, logits, -1e30)

    # online softmax update
    m_prev = m_ref[...]
    l_prev = l_ref[...]
    m_cur = jnp.max(logits, axis=-1, keepdims=True)
    m_new = jnp.maximum(m_prev, m_cur)
    alpha = jnp.exp(m_prev - m_new)
    p = jnp.exp(logits - m_new)                       # (G, Tp, Sb) f32
    l_new = alpha * l_prev + jnp.sum(p, axis=-1, keepdims=True)
    acc_ref[...] = alpha * acc_ref[...] + jnp.einsum(
        "gts,gsd->gtd", p.astype(bf16), v, preferred_element_type=f32)
    m_ref[...] = m_new
    l_ref[...] = l_new

    @pl.when(s == n_s_blocks - 1)
    def _():
        inv_l = pl.reciprocal(l_ref[...], approx=False)   # (G, Tp, 1)
        ctx = acc_ref[...] * inv_l                        # (G, Tp, hd) f32
        # per-group output projection -> lane-dense (Tp, E) partial.
        contrib = jnp.dot(ctx[0].astype(bf16), wo_ref[0],
                          preferred_element_type=f32)
        for i in range(1, group):
            contrib = contrib + jnp.dot(ctx[i].astype(bf16), wo_ref[i],
                                        preferred_element_type=f32)
        out_ref[...] = contrib
        if want_weights:
            # exact softmax (single S block is enforced in this mode)
            attnw_ref[...] = (p * inv_l).astype(bf16)


# ----------------------------------------------------------------------------
# parameters
# ----------------------------------------------------------------------------
def init_params(key, embed_dim):
    """Deterministic synthetic Linear params (PyTorch layout: weight (out, in))."""
    ks = jax.random.split(key, 8)
    def w(k):
        return jax.random.normal(k, (embed_dim, embed_dim), jnp.float32) * 0.05
    def b(k):
        return jax.random.normal(k, (embed_dim,), jnp.float32) * 0.05
    return {
        "wq": w(ks[0]), "bq": b(ks[1]),
        "wk": w(ks[2]), "bk": b(ks[3]),
        "wv": w(ks[4]), "bv": b(ks[5]),
        "wo": w(ks[6]), "bo": b(ks[7]),
    }


# ----------------------------------------------------------------------------
# forward wrapper
# ----------------------------------------------------------------------------
def mask2former_attention(hidden_states, params, *, num_heads,
                          attention_mask=None, position_embeddings=None,
                          key_value_states=None,
                          key_value_position_embeddings=None,
                          output_attentions=False,
                          s_block_size=512):
    """JAX/Pallas equivalent of Mask2FormerAttention.forward.

    hidden_states: (T, B, E) float32
    attention_mask: (B*num_heads, T, S) or None
    position_embeddings: (T, B, E) or None
    key_value_states: (S, B, E) or None (None -> self attention)
    key_value_position_embeddings: (S, B, E) or None
    returns: (attn_output (T, B, E), attn_weights (B, H, T, S) or None)
    """
    T, B, E = hidden_states.shape
    H = num_heads
    hd = E // H
    assert hd * H == E, "embed_dim must be divisible by num_heads"
    scaling = hd ** (-0.5)
    f32, bf16 = jnp.float32, jnp.bfloat16

    has_pos = position_embeddings is not None
    is_cross = key_value_states is not None
    has_kvpos = is_cross and (key_value_position_embeddings is not None)
    has_mask = attention_mask is not None

    # ---- host-side layout / position adds (done once, f32) ----
    hs = jnp.transpose(hidden_states, (1, 0, 2)).astype(f32)           # (B,T,E)
    pos = (jnp.transpose(position_embeddings, (1, 0, 2)).astype(f32)
           if has_pos else None)
    hs_q = hs + pos if has_pos else hs
    if is_cross:
        kv_orig = jnp.transpose(key_value_states, (1, 0, 2)).astype(f32)
        kvpos = (jnp.transpose(key_value_position_embeddings, (1, 0, 2)).astype(f32)
                 if has_kvpos else None)
        kv_k = kv_orig + kvpos if has_kvpos else kv_orig
    else:
        kv_orig = hs            # value input (no positions)
        kv_k = hs_q             # key input (with positions)
    S = kv_orig.shape[1]

    # ---- padding (sublane-dense T, S tileable into lane-dense chunks) ----
    T_pad = _round_up(T, 8)
    if output_attentions or S <= s_block_size:
        s_blk = _round_up(S, 8)
        S_pad = s_blk
    else:
        s_blk = max(8, int(s_block_size))
        if has_mask:
            s_blk = _round_up(s_blk, 128)   # mask block lane-dim constraint
        s_blk = _round_up(s_blk, 8)
        S_pad = _round_up(S, s_blk)
    n_s_blocks = S_pad // s_blk

    def pad_rows(x, L):
        return x if x.shape[1] == L else jnp.pad(
            x, ((0, 0), (0, L - x.shape[1]), (0, 0)))

    hs_q = pad_rows(hs_q, T_pad)
    kv_k = pad_rows(kv_k, S_pad)
    kv_v = pad_rows(kv_orig, S_pad)

    # ---- Q/K/V projections as lane-dense XLA GEMMs (bf16, f32 accum) ----
    wq_t = (params["wq"].T * scaling).astype(bf16)      # scaling folded in
    wk_t = params["wk"].T.astype(bf16)
    wv_t = params["wv"].T.astype(bf16)
    bq = (params["bq"] * scaling).astype(f32)
    bk = params["bk"].astype(f32)
    bv = params["bv"].astype(f32)

    def project(x, w, b):
        y = jnp.dot(x.astype(bf16), w, preferred_element_type=f32) + b
        L = y.shape[1]
        return y.reshape(B, L, H, hd).transpose(0, 2, 1, 3).astype(bf16)

    q = project(hs_q, wq_t, bq)            # (B, H, T_pad, hd) bf16
    k = project(kv_k, wk_t, bk)            # (B, H, S_pad, hd) bf16
    v = project(kv_v, wv_t, bv)            # (B, H, S_pad, hd) bf16

    wo_heads = params["wo"].T.reshape(H, hd, E).astype(bf16)   # (H, hd, E)
    bo = params["bo"].astype(f32)

    if has_mask:
        mask = attention_mask.reshape(B, H, T, S).astype(bf16)
        pt, ps = T_pad - T, S_pad - S
        if pt or ps:
            mask = jnp.pad(mask, ((0, 0), (0, 0), (0, pt), (0, ps)))

    # ---- grid / specs ----
    G = _pick_group_size(H, hd)
    NG = H // G

    operands = [q, k, v]
    in_specs = [
        pl.BlockSpec((None, G, T_pad, hd), lambda b, g, s: (b, g, 0, 0)),
        pl.BlockSpec((None, G, s_blk, hd), lambda b, g, s: (b, g, s, 0)),
        pl.BlockSpec((None, G, s_blk, hd), lambda b, g, s: (b, g, s, 0)),
    ]
    if has_mask:
        operands.append(mask)
        in_specs.append(pl.BlockSpec((None, G, T_pad, s_blk),
                                     lambda b, g, s: (b, g, 0, s)))
    operands.append(wo_heads)
    in_specs.append(pl.BlockSpec((G, hd, E), lambda b, g, s: (g, 0, 0)))

    out_specs = [pl.BlockSpec((None, None, T_pad, E),
                              lambda b, g, s: (b, g, 0, 0))]
    out_shape = [jax.ShapeDtypeStruct((B, NG, T_pad, E), f32)]
    if output_attentions:
        out_specs.append(pl.BlockSpec((None, G, T_pad, S_pad),
                                      lambda b, g, s: (b, g, 0, 0)))
        out_shape.append(jax.ShapeDtypeStruct((B, H, T_pad, S_pad), bf16))

    kernel = functools.partial(
        _flash_attention_kernel, group=G, kv_len=S, s_blk=s_blk,
        n_s_blocks=n_s_blocks, has_mask=has_mask,
        want_weights=output_attentions, needs_col_mask=(S_pad != S))

    call_kwargs = {}
    cp = _compiler_params()
    if cp is not None:
        call_kwargs["compiler_params"] = cp

    outs = pl.pallas_call(
        kernel,
        grid=(B, NG, n_s_blocks),
        in_specs=in_specs,
        out_specs=out_specs,
        out_shape=out_shape,
        scratch_shapes=[pltpu.VMEM((G, T_pad, 1), f32),
                        pltpu.VMEM((G, T_pad, 1), f32),
                        pltpu.VMEM((G, T_pad, hd), f32)],
        **call_kwargs,
    )(*operands)

    partial_out = outs[0]                               # (B, NG, T_pad, E)
    attn_out = partial_out.sum(axis=1) + bo             # (B, T_pad, E)
    attn_out = jnp.transpose(attn_out[:, :T, :], (1, 0, 2))    # (T, B, E)

    attn_w = None
    if output_attentions:
        attn_w = outs[1][:, :, :T, :S].astype(f32)      # (B, H, T, S)
    return attn_out, attn_w


# ----------------------------------------------------------------------------
# pure-JAX reference (f32) for validation
# ----------------------------------------------------------------------------
def _reference(hidden_states, params, num_heads, attention_mask=None,
               position_embeddings=None, key_value_states=None,
               key_value_position_embeddings=None):
    hs = jnp.transpose(hidden_states, (1, 0, 2))
    B, T, E = hs.shape
    hd = E // num_heads
    scaling = hd ** (-0.5)
    pos = (None if position_embeddings is None
           else jnp.transpose(position_embeddings, (1, 0, 2)))
    hs_orig = hs
    hs_q = hs if pos is None else hs + pos
    if key_value_states is None:
        kv_orig, kv = hs_orig, hs_q
    else:
        kv_orig = jnp.transpose(key_value_states, (1, 0, 2))
        kvpos = (None if key_value_position_embeddings is None
                 else jnp.transpose(key_value_position_embeddings, (1, 0, 2)))
        kv = kv_orig if kvpos is None else kv_orig + kvpos
    S = kv.shape[1]

    q = (hs_q @ params["wq"].T + params["bq"]) * scaling
    k = kv @ params["wk"].T + params["bk"]
    v = kv_orig @ params["wv"].T + params["bv"]

    def split(x):
        return x.reshape(B, x.shape[1], num_heads, hd).transpose(0, 2, 1, 3)

    qh, kh, vh = split(q), split(k), split(v)
    logits = jnp.einsum("bhtd,bhsd->bhts", qh, kh)
    if attention_mask is not None:
        logits = logits + attention_mask.reshape(B, num_heads, T, S)
    w = jax.nn.softmax(logits, axis=-1)
    ctx = jnp.einsum("bhts,bhsd->bhtd", w, vh)
    ctx = ctx.transpose(0, 2, 1, 3).reshape(B, T, E)
    out = ctx @ params["wo"].T + params["bo"]
    return jnp.transpose(out, (1, 0, 2)), w


# ----------------------------------------------------------------------------
# test
# ----------------------------------------------------------------------------
if __name__ == "__main__":
    B, T, E, H = 2, 8, 32, 4          # batch, seq, embed, heads
    key = jax.random.PRNGKey(0)
    (k_hs, k_pos, k_mask, k_params,
     k_kv, k_kvpos, k_hs2, k_pos2) = jax.random.split(key, 8)

    params = init_params(k_params, E)

    # ---- case 1: self-attention with positions + mask, weights requested ----
    hidden_states = jax.random.normal(k_hs, (T, B, E), jnp.float32)
    position_embeddings = jax.random.normal(k_pos, (T, B, E), jnp.float32)
    attention_mask = jax.random.normal(k_mask, (B * H, T, T), jnp.float32) * 0.5

    out, attn_w = mask2former_attention(
        hidden_states, params, num_heads=H,
        attention_mask=attention_mask,
        position_embeddings=position_embeddings,
        output_attentions=True)
    out = jax.block_until_ready(out)
    attn_w = jax.block_until_ready(attn_w)

    ref_out, ref_w = _reference(
        hidden_states, params, H,
        attention_mask=attention_mask,
        position_embeddings=position_embeddings)

    assert out.shape == (T, B, E)
    assert attn_w.shape == (B, H, T, T)
    assert jnp.allclose(out, ref_out, atol=2e-2, rtol=2e-2), \
        float(jnp.max(jnp.abs(out - ref_out)))
    assert jnp.allclose(attn_w, ref_w, atol=2e-2, rtol=2e-2), \
        float(jnp.max(jnp.abs(attn_w - ref_w)))

    # ---- case 2: cross-attention, unaligned T, S-tiled flash path ----------
    Tq, S = 6, 40
    hs2 = jax.random.normal(k_hs2, (Tq, B, E), jnp.float32)
    pos2 = jax.random.normal(k_pos2, (Tq, B, E), jnp.float32)
    kv2 = jax.random.normal(k_kv, (S, B, E), jnp.float32)
    kvpos2 = jax.random.normal(k_kvpos, (S, B, E), jnp.float32)

    out2, attn_w2 = mask2former_attention(
        hs2, params, num_heads=H,
        position_embeddings=pos2,
        key_value_states=kv2,
        key_value_position_embeddings=kvpos2,
        output_attentions=False,
        s_block_size=16)           # force n_s_blocks=3 to exercise online softmax
    out2 = jax.block_until_ready(out2)

    ref_out2, _ = _reference(
        hs2, params, H,
        position_embeddings=pos2,
        key_value_states=kv2,
        key_value_position_embeddings=kvpos2)

    assert attn_w2 is None
    assert out2.shape == (Tq, B, E)
    assert jnp.allclose(out2, ref_out2, atol=2e-2, rtol=2e-2), \
        float(jnp.max(jnp.abs(out2 - ref_out2)))

    print("KERNEL_OK")
</pallas_src>

<mosaic_0001>
module attributes {stable_mosaic.version = 11 : i64} {
  func.func @_flash_attention_kernel(%arg0: i32, %arg1: i32, %arg2: i32, %arg3: memref<1x2x8x8xbf16, #tpu.memory_space<vmem>>, %arg4: memref<1x2x8x8xbf16, #tpu.memory_space<vmem>>, %arg5: memref<1x2x8x8xbf16, #tpu.memory_space<vmem>>, %arg6: memref<1x2x8x8xbf16, #tpu.memory_space<vmem>>, %arg7: memref<2x8x32xbf16, #tpu.memory_space<vmem>>, %arg8: memref<1x1x8x32xf32, #tpu.memory_space<vmem>>, %arg9: memref<1x2x8x8xbf16, #tpu.memory_space<vmem>>, %arg10: memref<2x8x1xf32, #tpu.memory_space<vmem>>, %arg11: memref<2x8x1xf32, #tpu.memory_space<vmem>>, %arg12: memref<2x8x8xf32, #tpu.memory_space<vmem>>) attributes {dimension_semantics = [#tpu.dimension_semantics<parallel>, #tpu.dimension_semantics<parallel>, #tpu.dimension_semantics<arbitrary>], iteration_bounds = array<i64: 2, 2, 1>, scalar_prefetch = 0 : i64, scratch_operands = 3 : i64, tpu.core_type = #tpu.core_type<tc>, window_params = [{transform_indices = @transform_0, window_bounds = array<i64: 1, 2, 8, 8>}, {transform_indices = @transform_1, window_bounds = array<i64: 1, 2, 8, 8>}, {transform_indices = @transform_2, window_bounds = array<i64: 1, 2, 8, 8>}, {transform_indices = @transform_3, window_bounds = array<i64: 1, 2, 8, 8>}, {transform_indices = @transform_4, window_bounds = array<i64: 2, 8, 32>}, {transform_indices = @transform_5, window_bounds = array<i64: 1, 1, 8, 32>}, {transform_indices = @transform_6, window_bounds = array<i64: 1, 2, 8, 8>}]} {
    %c0_i32 = arith.constant 0 : i32
    %0 = arith.cmpi eq, %arg2, %c0_i32 : i32
    %1 = arith.extui %0 : i1 to i32
    %c0_i32_0 = arith.constant 0 : i32
    %2 = arith.cmpi ne, %1, %c0_i32_0 : i32
    scf.if %2 {
      %cst_39 = arith.constant -1.000000e+30 : f32
      %40 = vector.broadcast %cst_39 : f32 to vector<2x8x1xf32>
      %c0_40 = arith.constant 0 : index
      %c0_41 = arith.constant 0 : index
      %c0_42 = arith.constant 0 : index
      %41 = vector.load %arg10[%c0_40, %c0_41, %c0_42] : memref<2x8x1xf32, #tpu.memory_space<vmem>>, vector<2x8x1xf32>
      tpu.vector_store %arg10[%c0_40, %c0_41, %c0_42], %40 {strides = array<i32>} : memref<2x8x1xf32, #tpu.memory_space<vmem>>, vector<2x8x1xf32>,
      %cst_43 = arith.constant 0.000000e+00 : f32
      %42 = vector.broadcast %cst_43 : f32 to vector<2x8x1xf32>
      %c0_44 = arith.constant 0 : index
      %c0_45 = arith.constant 0 : index
      %c0_46 = arith.constant 0 : index
      %43 = vector.load %arg11[%c0_44, %c0_45, %c0_46] : memref<2x8x1xf32, #tpu.memory_space<vmem>>, vector<2x8x1xf32>
      tpu.vector_store %arg11[%c0_44, %c0_45, %c0_46], %42 {strides = array<i32>} : memref<2x8x1xf32, #tpu.memory_space<vmem>>, vector<2x8x1xf32>,
      %cst_47 = arith.constant 0.000000e+00 : f32
      %44 = vector.broadcast %cst_47 : f32 to vector<2x8x8xf32>
      %c0_48 = arith.constant 0 : index
      %c0_49 = arith.constant 0 : index
      %c0_50 = arith.constant 0 : index
      %45 = vector.load %arg12[%c0_48, %c0_49, %c0_50] : memref<2x8x8xf32, #tpu.memory_space<vmem>>, vector<2x8x8xf32>
      tpu.vector_store %arg12[%c0_48, %c0_49, %c0_50], %44 {strides = array<i32>} : memref<2x8x8xf32, #tpu.memory_space<vmem>>, vector<2x8x8xf32>,
    } else {
    }
    %c0 = arith.constant 0 : index
    %c0_1 = arith.constant 0 : index
    %c0_2 = arith.constant 0 : index
    %c0_3 = arith.constant 0 : index
    %3 = vector.load %arg3[%c0, %c0_1, %c0_2, %c0_3] : memref<1x2x8x8xbf16, #tpu.memory_space<vmem>>, vector<1x2x8x8xbf16>
    %4 = vector.shape_cast %3 : vector<1x2x8x8xbf16> to vector<2x8x8xbf16>
    %c0_4 = arith.constant 0 : index
    %c0_5 = arith.constant 0 : index
    %c0_6 = arith.constant 0 : index
    %c0_7 = arith.constant 0 : index
    %5 = vector.load %arg4[%c0_4, %c0_5, %c0_6, %c0_7] : memref<1x2x8x8xbf16, #tpu.memory_space<vmem>>, vector<1x2x8x8xbf16>
    %6 = vector.shape_cast %5 : vector<1x2x8x8xbf16> to vector<2x8x8xbf16>
    %c0_8 = arith.constant 0 : index
    %c0_9 = arith.constant 0 : index
    %c0_10 = arith.constant 0 : index
    %c0_11 = arith.constant 0 : index
    %7 = vector.load %arg5[%c0_8, %c0_9, %c0_10, %c0_11] : memref<1x2x8x8xbf16, #tpu.memory_space<vmem>>, vector<1x2x8x8xbf16>
    %8 = vector.shape_cast %7 : vector<1x2x8x8xbf16> to vector<2x8x8xbf16>
    "tpu.trace_start"() <{level = 10 : i32, message = "gtd,gsd->gts"}> : () -> ()
    %cst = arith.constant dense<0.000000e+00> : vector<2x8x8xf32>
    %9 = tpu.matmul %4, %6, %cst {dimension_numbers = #tpu.dot_dimension_numbers<[2], [2], [1], [1], [0, 0, 0, 1, 1, 1], [0], [0]>} : vector<2x8x8xbf16>, vector<2x8x8xbf16>, vector<2x8x8xf32> -> vector<2x8x8xf32>
    "tpu.trace_stop"() : () -> ()
    %c0_12 = arith.constant 0 : index
    %c0_13 = arith.constant 0 : index
    %c0_14 = arith.constant 0 : index
    %c0_15 = arith.constant 0 : index
    %10 = vector.load %arg6[%c0_12, %c0_13, %c0_14, %c0_15] : memref<1x2x8x8xbf16, #tpu.memory_space<vmem>>, vector<1x2x8x8xbf16>
    %11 = vector.shape_cast %10 : vector<1x2x8x8xbf16> to vector<2x8x8xbf16>
    %12 = arith.extf %11 : vector<2x8x8xbf16> to vector<2x8x8xf32>
    %13 = arith.addf %9, %12 : vector<2x8x8xf32>
    %c0_16 = arith.constant 0 : index
    %c0_17 = arith.constant 0 : index
    %c0_18 = arith.constant 0 : index
    %14 = vector.load %arg10[%c0_16, %c0_17, %c0_18] : memref<2x8x1xf32, #tpu.memory_space<vmem>>, vector<2x8x1xf32>
    %c0_19 = arith.constant 0 : index
    %c0_20 = arith.constant 0 : index
    %c0_21 = arith.constant 0 : index
    %15 = vector.load %arg11[%c0_19, %c0_20, %c0_21] : memref<2x8x1xf32, #tpu.memory_space<vmem>>, vector<2x8x1xf32>
    %cst_22 = arith.constant dense<0xFF800000> : vector<2x8xf32>
    %16 = vector.multi_reduction <maximumf>, %13, %cst_22 [2] : vector<2x8x8xf32> to vector<2x8xf32>
    %17 = vector.shape_cast %16 : vector<2x8xf32> to vector<2x8x1xf32>
    %18 = arith.maximumf %14, %17 : vector<2x8x1xf32>
    %19 = arith.subf %14, %18 : vector<2x8x1xf32>
    %20 = math.exp %19 : vector<2x8x1xf32>
    %21 = vector.broadcast %18 : vector<2x8x1xf32> to vector<2x8x8xf32>
    %22 = arith.subf %13, %21 : vector<2x8x8xf32>
    %23 = math.exp %22 : vector<2x8x8xf32>
    %24 = arith.mulf %20, %15 : vector<2x8x1xf32>
    %cst_23 = arith.constant dense<0.000000e+00> : vector<2x8xf32>
    %25 = vector.multi_reduction <add>, %23, %cst_23 [2] : vector<2x8x8xf32> to vector<2x8xf32>
    %26 = vector.shape_cast %25 : vector<2x8xf32> to vector<2x8x1xf32>
    %27 = arith.addf %24, %26 : vector<2x8x1xf32>
    %c0_24 = arith.constant 0 : index
    %c0_25 = arith.constant 0 : index
    %c0_26 = arith.constant 0 : index
    %28 = vector.load %arg12[%c0_24, %c0_25, %c0_26] : memref<2x8x8xf32, #tpu.memory_space<vmem>>, vector<2x8x8xf32>
    %29 = vector.broadcast %20 : vector<2x8x1xf32> to vector<2x8x8xf32>
    %30 = arith.mulf %29, %28 : vector<2x8x8xf32>
    %31 = arith.truncf %23 : vector<2x8x8xf32> to vector<2x8x8xbf16>
    "tpu.trace_start"() <{level = 10 : i32, message = "gts,gsd->gtd"}> : () -> ()
    %cst_27 = arith.constant dense<0.000000e+00> : vector<2x8x8xf32>
    %32 = tpu.matmul %31, %8, %cst_27 {dimension_numbers = #tpu.dot_dimension_numbers<[2], [1], [1], [2], [0, 0, 0, 1, 1, 2], [0], [0]>} : vector<2x8x8xbf16>, vector<2x8x8xbf16>, vector<2x8x8xf32> -> vector<2x8x8xf32>
    "tpu.trace_stop"() : () -> ()
    %33 = arith.addf %30, %32 : vector<2x8x8xf32>
    %c0_28 = arith.constant 0 : index
    %c0_29 = arith.constant 0 : index
    %c0_30 = arith.constant 0 : index
    %34 = vector.load %arg12[%c0_28, %c0_29, %c0_30] : memref<2x8x8xf32, #tpu.memory_space<vmem>>, vector<2x8x8xf32>
    tpu.vector_store %arg12[%c0_28, %c0_29, %c0_30], %33 {strides = array<i32>} : memref<2x8x8xf32, #tpu.memory_space<vmem>>, vector<2x8x8xf32>,
    %c0_31 = arith.constant 0 : index
    %c0_32 = arith.constant 0 : index
    %c0_33 = arith.constant 0 : index
    %35 = vector.load %arg10[%c0_31, %c0_32, %c0_33] : memref<2x8x1xf32, #tpu.memory_space<vmem>>, vector<2x8x1xf32>
    tpu.vector_store %arg10[%c0_31, %c0_32, %c0_33], %18 {strides = array<i32>} : memref<2x8x1xf32, #tpu.memory_space<vmem>>, vector<2x8x1xf32>,
    %c0_34 = arith.constant 0 : index
    %c0_35 = arith.constant 0 : index
    %c0_36 = arith.constant 0 : index
    %36 = vector.load %arg11[%c0_34, %c0_35, %c0_36] : memref<2x8x1xf32, #tpu.memory_space<vmem>>, vector<2x8x1xf32>
    tpu.vector_store %arg11[%c0_34, %c0_35, %c0_36], %27 {strides = array<i32>} : memref<2x8x1xf32, #tpu.memory_space<vmem>>, vector<2x8x1xf32>,
    %c0_i32_37 = arith.constant 0 : i32
    %37 = arith.cmpi eq, %arg2, %c0_i32_37 : i32
    %38 = arith.extui %37 : i1 to i32
    %c0_i32_38 = arith.constant 0 : i32
    %39 = arith.cmpi ne, %38, %c0_i32_38 : i32
    scf.if %39 {
      %c0_39 = arith.constant 0 : index
      %c0_40 = arith.constant 0 : index
      %c0_41 = arith.constant 0 : index
      %40 = vector.load %arg11[%c0_39, %c0_40, %c0_41] : memref<2x8x1xf32, #tpu.memory_space<vmem>>, vector<2x8x1xf32>
      %41 = tpu.reciprocal %40 : vector<2x8x1xf32> -> vector<2x8x1xf32>
      %c0_42 = arith.constant 0 : index
      %c0_43 = arith.constant 0 : index
      %c0_44 = arith.constant 0 : index
      %42 = vector.load %arg12[%c0_42, %c0_43, %c0_44] : memref<2x8x8xf32, #tpu.memory_space<vmem>>, vector<2x8x8xf32>
      %43 = vector.broadcast %41 : vector<2x8x1xf32> to vector<2x8x8xf32>
      %44 = arith.mulf %42, %43 : vector<2x8x8xf32>
      %45 = vector.extract_strided_slice %44 {offsets = [0, 0, 0], sizes = [1, 8, 8], strides = [1, 1, 1]} : vector<2x8x8xf32> to vector<1x8x8xf32>
      %46 = vector.shape_cast %45 : vector<1x8x8xf32> to vector<8x8xf32>
      %47 = arith.truncf %46 : vector<8x8xf32> to vector<8x8xbf16>
      %c0_45 = arith.constant 0 : index
      %c0_46 = arith.constant 0 : index
      %c0_47 = arith.constant 0 : index
      %48 = vector.load %arg7[%c0_45, %c0_46, %c0_47] : memref<2x8x32xbf16, #tpu.memory_space<vmem>>, vector<1x8x32xbf16>
      %49 = vector.shape_cast %48 : vector<1x8x32xbf16> to vector<8x32xbf16>
      %cst_48 = arith.constant dense<0.000000e+00> : vector<8x32xf32>
      %50 = tpu.matmul %47, %49, %cst_48 {dimension_numbers = #tpu.dot_dimension_numbers<[1], [0], [0], [1], [0, 0, 1, 1], [], []>} : vector<8x8xbf16>, vector<8x32xbf16>, vector<8x32xf32> -> vector<8x32xf32>
      %51 = vector.extract_strided_slice %44 {offsets = [1, 0, 0], sizes = [1, 8, 8], strides = [1, 1, 1]} : vector<2x8x8xf32> to vector<1x8x8xf32>
      %52 = vector.shape_cast %51 : vector<1x8x8xf32> to vector<8x8xf32>
      %53 = arith.truncf %52 : vector<8x8xf32> to vector<8x8xbf16>
      %c1 = arith.constant 1 : index
      %c0_49 = arith.constant 0 : index
      %c0_50 = arith.constant 0 : index
      %54 = vector.load %arg7[%c1, %c0_49, %c0_50] : memref<2x8x32xbf16, #tpu.memory_space<vmem>>, vector<1x8x32xbf16>
      %55 = vector.shape_cast %54 : vector<1x8x32xbf16> to vector<8x32xbf16>
      %cst_51 = arith.constant dense<0.000000e+00> : vector<8x32xf32>
      %56 = tpu.matmul %53, %55, %cst_51 {dimension_numbers = #tpu.dot_dimension_numbers<[1], [0], [0], [1], [0, 0, 1, 1], [], []>} : vector<8x8xbf16>, vector<8x32xbf16>, vector<8x32xf32> -> vector<8x32xf32>
      %57 = arith.addf %50, %56 : vector<8x32xf32>
      %c0_52 = arith.constant 0 : index
      %c0_53 = arith.constant 0 : index
      %c0_54 = arith.constant 0 : index
      %c0_55 = arith.constant 0 : index
      %58 = vector.load %arg8[%c0_52, %c0_53, %c0_54, %c0_55] : memref<1x1x8x32xf32, #tpu.memory_space<vmem>>, vector<1x1x8x32xf32>
      %59 = vector.shape_cast %58 : vector<1x1x8x32xf32> to vector<8x32xf32>
      %60 = vector.shape_cast %57 : vector<8x32xf32> to vector<1x1x8x32xf32>
      tpu.vector_store %arg8[%c0_52, %c0_53, %c0_54, %c0_55], %60 {strides = array<i32>} : memref<1x1x8x32xf32, #tpu.memory_space<vmem>>, vector<1x1x8x32xf32>,
      %61 = vector.broadcast %41 : vector<2x8x1xf32> to vector<2x8x8xf32>
      %62 = arith.mulf %23, %61 : vector<2x8x8xf32>
      %63 = arith.truncf %62 : vector<2x8x8xf32> to vector<2x8x8xbf16>
      %c0_56 = arith.constant 0 : index
      %c0_57 = arith.constant 0 : index
      %c0_58 = arith.constant 0 : index
      %c0_59 = arith.constant 0 : index
      %64 = vector.load %arg9[%c0_56, %c0_57, %c0_58, %c0_59] : memref<1x2x8x8xbf16, #tpu.memory_space<vmem>>, vector<1x2x8x8xbf16>
      %65 = vector.shape_cast %64 : vector<1x2x8x8xbf16> to vector<2x8x8xbf16>
      %66 = vector.shape_cast %63 : vector<2x8x8xbf16> to vector<1x2x8x8xbf16>
      tpu.vector_store %arg9[%c0_56, %c0_57, %c0_58, %c0_59], %66 {strides = array<i32>} : memref<1x2x8x8xbf16, #tpu.memory_space<vmem>>, vector<1x2x8x8xbf16>,
    } else {
    }
    return
  }
  func.func @transform_0(%arg0: i32, %arg1: i32, %arg2: i32) -> (i32, i32, i32, i32) {
    %c0_i32 = arith.constant 0 : i32
    %c0_i32_0 = arith.constant 0 : i32
    %c0_i32_1 = arith.constant 0 : i32
    return %arg0, %arg1, %c0_i32, %c0_i32_0 : i32, i32, i32, i32
  }
  func.func @transform_1(%arg0: i32, %arg1: i32, %arg2: i32) -> (i32, i32, i32, i32) {
    %c0_i32 = arith.constant 0 : i32
    %c0_i32_0 = arith.constant 0 : i32
    return %arg0, %arg1, %arg2, %c0_i32 : i32, i32, i32, i32
  }
  func.func @transform_2(%arg0: i32, %arg1: i32, %arg2: i32) -> (i32, i32, i32, i32) {
    %c0_i32 = arith.constant 0 : i32
    %c0_i32_0 = arith.constant 0 : i32
    return %arg0, %arg1, %arg2, %c0_i32 : i32, i32, i32, i32
  }
  func.func @transform_3(%arg0: i32, %arg1: i32, %arg2: i32) -> (i32, i32, i32, i32) {
    %c0_i32 = arith.constant 0 : i32
    %c0_i32_0 = arith.constant 0 : i32
    return %arg0, %arg1, %c0_i32, %arg2 : i32, i32, i32, i32
  }
  func.func @transform_4(%arg0: i32, %arg1: i32, %arg2: i32) -> (i32, i32, i32) {
    %c0_i32 = arith.constant 0 : i32
    %c0_i32_0 = arith.constant 0 : i32
    %c0_i32_1 = arith.constant 0 : i32
    return %arg1, %c0_i32, %c0_i32_0 : i32, i32, i32
  }
  func.func @transform_5(%arg0: i32, %arg1: i32, %arg2: i32) -> (i32, i32, i32, i32) {
    %c0_i32 = arith.constant 0 : i32
    %c0_i32_0 = arith.constant 0 : i32
    %c0_i32_1 = arith.constant 0 : i32
    return %arg0, %arg1, %c0_i32, %c0_i32_0 : i32, i32, i32, i32
  }
  func.func @transform_6(%arg0: i32, %arg1: i32, %arg2: i32) -> (i32, i32, i32, i32) {
    %c0_i32 = arith.constant 0 : i32
    %c0_i32_0 = arith.constant 0 : i32
    %c0_i32_1 = arith.constant 0 : i32
    return %arg0, %arg1, %c0_i32, %c0_i32_0 : i32, i32, i32, i32
  }
}

</mosaic_0001>

<llo_original>
// kernel: tpu_custom_call.1
$region0: #{tpu_custom_call.1}
  #allocation0 [shape = 'u32[]', space=smem, size = 0x4, offset = 0x4, fixed_abs, tag = 'smem constant byte address 0x4 - core index']
  #allocation1 [shape = 'u32[144,128]{1,0:T(1,128)}', space=vmem, size = 0x12000, scoped, tag = 'internal scratch']
  #allocation2 [shape = 'f32[2,8,1]{2,1,0:T(8,128)}', space=vmem, size = 0x2000, scoped, tag = 'scratch operand']
  #allocation3 [shape = 'f32[2,8,1]{2,1,0:T(8,128)}', space=vmem, size = 0x2000, scoped, tag = 'scratch operand']
  #allocation4 [shape = 'f32[2,8,8]{2,1,0:T(8,128)}', space=vmem, size = 0x2000, scoped, tag = 'scratch operand']
  %s0 = inlined_call_operand.hbm [shape: bf16[2,4,8,8], index: 0, kind: input, shape index: {}]
  %s1 = inlined_call_operand.hbm [shape: bf16[2,4,8,8], index: 1, kind: input, shape index: {}]
  %s2 = inlined_call_operand.hbm [shape: bf16[2,4,8,8], index: 2, kind: input, shape index: {}]
  %s3 = inlined_call_operand.hbm [shape: bf16[2,4,8,8], index: 3, kind: input, shape index: {}]
  %s4 = inlined_call_operand.hbm [shape: bf16[4,8,32], index: 4, kind: input, shape index: {}]
  %s5 = inlined_call_operand.hbm [shape: f32[2,2,8,32], index: 5, kind: output, shape index: {0}]
  %s6 = inlined_call_operand.hbm [shape: bf16[2,4,8,8], index: 6, kind: output, shape index: {1}]
  %7 = xla_tuple %s5, %s6
  %s8 = sld [smem:[#allocation0]]
  $region89: #{tpu_custom_call.1} parent=0
    _
  %s10 = ssub.s32 1, %s8
  %s11 = scalar_select 0, %s10, %s8
  $region1: #{tpu_custom_call.1} parent=0
    #allocation5 [shape = 'u8[8192]{0}', space=vmem, size = 0x2000, scoped, tag = 'input window, operand 0']
    #allocation6 [shape = 's32[2]{0}', space=sflag, size = 0x8, scoped, tag = 'scoped memory for tpu_custom_call.1']
    #allocation7 [shape = 's32[2]{0}', space=sflag, size = 0x8, scoped, tag = 'scoped memory for tpu_custom_call.1']
    #allocation8 [shape = 'u8[8192]{0}', space=vmem, size = 0x2000, scoped, tag = 'input window, operand 1']
    #allocation9 [shape = 's32[2]{0}', space=sflag, size = 0x8, scoped, tag = 'scoped memory for tpu_custom_call.1']
    #allocation10 [shape = 'u8[8192]{0}', space=vmem, size = 0x2000, scoped, tag = 'input window, operand 2']
    #allocation11 [shape = 'u8[8192]{0}', space=vmem, size = 0x2000, scoped, tag = 'input window, operand 3']
    #allocation12 [shape = 's32[2]{0}', space=sflag, size = 0x8, scoped, tag = 'scoped memory for tpu_custom_call.1']
    #allocation13 [shape = 'u8[8192]{0}', space=vmem, size = 0x2000, scoped, tag = 'input window, operand 4']
    #allocation14 [shape = 'u8[8192]{0}', space=vmem, size = 0x2000, scoped, tag = 'output window, operand 0']
    #allocation15 [shape = 'u8[8192]{0}', space=vmem, size = 0x2000, scoped, tag = 'output window, operand 1']
    #allocation16 [shape = 's32[2]{0}', space=sflag, size = 0x8, scoped, tag = 'scoped memory for tpu_custom_call.1']
    %12 = vsyncpa [#allocation6], 0
    %s13 = scalar_lea.sflag [#allocation6], 1
    %14 = vsyncpa %s13, 0
    %15 = vsyncpa [#allocation9], 0
    %s16 = scalar_lea.sflag [#allocation9], 1
    %17 = vsyncpa %s16, 0
    %18 = vsyncpa [#allocation12], 0
    %s19 = scalar_lea.sflag [#allocation12], 1
    %20 = vsyncpa %s19, 0
    %21 = vsyncpa [#allocation7], 0
    %s22 = scalar_lea.sflag [#allocation7], 1
    %23 = vsyncpa %s22, 0
    %24 = vsyncpa [#allocation16], 0
    %s25 = scalar_lea.sflag [#allocation16], 1
    %26 = vsyncpa %s25, 0
    loop: start=0, step=1, limit=6
    $region2: #{tpu_custom_call.1} parent=1 // loop_pre_header
      _
    $region3: #{tpu_custom_call.1} parent=1 // loop_header
      %s28 = sphi 0, %s32
      %p29 = scmp.ge.s32.totalorder %s28, 6
      %s35 = sphi 0, %s54
      %s36 = sphi 0, %s50
      %s37 = sphi 0, %s46
      %s38 = sphi 0, %s35
      %s39 = sphi 0, %s36
      %s40 = sphi 0, %s37
      %s41 = sphi 0, %s38
      %s42 = sphi 0, %s39
      %s43 = sphi 0, %s40
      %s59 = sphi 0, %s61
      %s62 = sphi 0, %s59
      %s63 = sphi 0, %s62
      %s79 = sphi 0, %s63
      %s89 = sphi 0, %s91
      %s92 = sphi 0, %s89
      %s93 = sphi 0, %s92
      %s109 = sphi 0, %s93
      %s119 = sphi 0, %s121
      %s122 = sphi 0, %s119
      %s123 = sphi 0, %s122
      %s139 = sphi 0, %s123
      %s149 = sphi 0, %s151
      %s152 = sphi 0, %s149
      %s153 = sphi 0, %s152
      %s169 = sphi 0, %s153
      %s175 = sphi 0, %s177
      %s178 = sphi 0, %s175
      %s179 = sphi 0, %s178
      %s195 = sphi 0, %s179
      %s203 = sphi 0, %s205
      %s206 = sphi 0, %s203
      %s207 = sphi 0, %s206
      %s223 = sphi 0, %s207
      %s231 = sphi 0, %s233
      %s234 = sphi 0, %s231
      %s235 = sphi 0, %s234
      %s251 = sphi 0, %s235
    $region4: #{tpu_custom_call.1} parent=1 // loop_header_branch
      %31 = sbr.rel (%p29) target = $region8
    $region5: #{tpu_custom_call.1} parent=1 // loop_body
      %s33 = ssub.s32 %s28, 1
      %s34 = ssub.s32 %s28, 2
      %s44 = sadd.s32 1, %s37
      %p45 = scmp.ge.s32.totalorder %s44, 1
      %s46 = scalar_select %p45, 0, %s44
      %s47 = sadd.s32 1, %s36
      %s48 = scalar_select %p45, %s47, %s36
      %p49 = scmp.ge.s32.totalorder %s48, 2
      %s50 = scalar_select %p49, 0, %s48
      %s51 = sadd.s32 1, %s35
      %s52 = scalar_select %p49, %s51, %s35
      %p53 = scmp.ge.s32.totalorder %s52, 2
      %s54 = scalar_select %p53, 0, %s52
      %s55 = ssub.s32 %s35, %s54
      %s56 = ssub.s32 %s36, %s50
      %s57 = sor.u32 %s55, %s56
      %p58 = scmp.eq.s32.totalorder %s57, 0
      %s60 = sadd.s32 %s59, 1
      %s61 = scalar_select %p58, %s59, %s60
      %p64 = pneg %p58
      %p65 = scmp.eq.s32.totalorder %s28, 3
      %p66 = por %p64, %p65
      %p67 = scmp.ne.s32.totalorder %s59, %s62
      %p68 = scmp.eq.s32.totalorder %s28, 0
      %p69 = por %p67, %p68
      %p70 = scmp.ne.s32.totalorder %s59, %s62
      %p71 = scmp.eq.s32.totalorder %s33, 3
      %p72 = por %p70, %p71
      %p73 = scmp.ne.s32.totalorder %s62, %s63
      %p74 = scmp.eq.s32.totalorder %s33, 0
      %p75 = por %p73, %p74
      %p76 = scmp.ne.s32.totalorder %s62, %s63
      %p77 = scmp.eq.s32.totalorder %s34, 3
      %p78 = por %p76, %p77
      %p80 = scmp.ne.s32.totalorder %s63, %s79
      %p81 = scmp.eq.s32.totalorder %s34, 0
      %p82 = por %p80, %p81
      %s83 = ssub.s32 %s35, %s54
      %s84 = ssub.s32 %s36, %s50
      %s85 = sor.u32 %s83, %s84
      %s86 = ssub.s32 %s37, %s46
      %s87 = sor.u32 %s85, %s86
      %p88 = scmp.eq.s32.totalorder %s87, 0
      %s90 = sadd.s32 %s89, 1
      %s91 = scalar_select %p88, %s89, %s90
      %p94 = pneg %p88
      %p95 = scmp.eq.s32.totalorder %s28, 3
      %p96 = por %p94, %p95
      %p97 = scmp.ne.s32.totalorder %s89, %s92
      %p98 = scmp.eq.s32.totalorder %s28, 0
      %p99 = por %p97, %p98
      %p100 = scmp.ne.s32.totalorder %s89, %s92
      %p101 = scmp.eq.s32.totalorder %s33, 3
      %p102 = por %p100, %p101
      %p103 = scmp.ne.s32.totalorder %s92, %s93
      %p104 = scmp.eq.s32.totalorder %s33, 0
      %p105 = por %p103, %p104
      %p106 = scmp.ne.s32.totalorder %s92, %s93
      %p107 = scmp.eq.s32.totalorder %s34, 3
      %p108 = por %p106, %p107
      %p110 = scmp.ne.s32.totalorder %s93, %s109
      %p111 = scmp.eq.s32.totalorder %s34, 0
      %p112 = por %p110, %p111
      %s113 = ssub.s32 %s35, %s54
      %s114 = ssub.s32 %s36, %s50
      %s115 = sor.u32 %s113, %s114
      %s116 = ssub.s32 %s37, %s46
      %s117 = sor.u32 %s115, %s116
      %p118 = scmp.eq.s32.totalorder %s117, 0
      %s120 = sadd.s32 %s119, 1
      %s121 = scalar_select %p118, %s119, %s120
      %p124 = pneg %p118
      %p125 = scmp.eq.s32.totalorder %s28, 3
      %p126 = por %p124, %p125
      %p127 = scmp.ne.s32.totalorder %s119, %s122
      %p128 = scmp.eq.s32.totalorder %s28, 0
      %p129 = por %p127, %p128
      %p130 = scmp.ne.s32.totalorder %s119, %s122
      %p131 = scmp.eq.s32.totalorder %s33, 3
      %p132 = por %p130, %p131
      %p133 = scmp.ne.s32.totalorder %s122, %s123
      %p134 = scmp.eq.s32.totalorder %s33, 0
      %p135 = por %p133, %p134
      %p136 = scmp.ne.s32.totalorder %s122, %s123
      %p137 = scmp.eq.s32.totalorder %s34, 3
      %p138 = por %p136, %p137
      %p140 = scmp.ne.s32.totalorder %s123, %s139
      %p141 = scmp.eq.s32.totalorder %s34, 0
      %p142 = por %p140, %p141
      %s143 = ssub.s32 %s35, %s54
      %s144 = ssub.s32 %s36, %s50
      %s145 = sor.u32 %s143, %s144
      %s146 = ssub.s32 %s37, %s46
      %s147 = sor.u32 %s145, %s146
      %p148 = scmp.eq.s32.totalorder %s147, 0
      %s150 = sadd.s32 %s149, 1
      %s151 = scalar_select %p148, %s149, %s150
      %p154 = pneg %p148
      %p155 = scmp.eq.s32.totalorder %s28, 3
      %p156 = por %p154, %p155
      %p157 = scmp.ne.s32.totalorder %s149, %s152
      %p158 = scmp.eq.s32.totalorder %s28, 0
      %p159 = por %p157, %p158
      %p160 = scmp.ne.s32.totalorder %s149, %s152
      %p161 = scmp.eq.s32.totalorder %s33, 3
      %p162 = por %p160, %p161
      %p163 = scmp.ne.s32.totalorder %s152, %s153
      %p164 = scmp.eq.s32.totalorder %s33, 0
      %p165 = por %p163, %p164
      %p166 = scmp.ne.s32.totalorder %s152, %s153
      %p167 = scmp.eq.s32.totalorder %s34, 3
      %p168 = por %p166, %p167
      %p170 = scmp.ne.s32.totalorder %s153, %s169
      %p171 = scmp.eq.s32.totalorder %s34, 0
      %p172 = por %p170, %p171
      %s173 = ssub.s32 %s36, %s50
      %p174 = scmp.eq.s32.totalorder %s173, 0
      %s176 = sadd.s32 %s175, 1
      %s177 = scalar_select %p174, %s175, %s176
      %p180 = pneg %p174
      %p181 = scmp.eq.s32.totalorder %s28, 3
      %p182 = por %p180, %p181
      %p183 = scmp.ne.s32.totalorder %s175, %s178
      %p184 = scmp.eq.s32.totalorder %s28, 0
      %p185 = por %p183, %p184
      %p186 = scmp.ne.s32.totalorder %s175, %s178
      %p187 = scmp.eq.s32.totalorder %s33, 3
      %p188 = por %p186, %p187
      %p189 = scmp.ne.s32.totalorder %s178, %s179
      %p190 = scmp.eq.s32.totalorder %s33, 0
      %p191 = por %p189, %p190
      %p192 = scmp.ne.s32.totalorder %s178, %s179
      %p193 = scmp.eq.s32.totalorder %s34, 3
      %p194 = por %p192, %p193
      %p196 = scmp.ne.s32.totalorder %s179, %s195
      %p197 = scmp.eq.s32.totalorder %s34, 0
      %p198 = por %p196, %p197
      %s199 = ssub.s32 %s35, %s54
      %s200 = ssub.s32 %s36, %s50
      %s201 = sor.u32 %s199, %s200
      %p202 = scmp.eq.s32.totalorder %s201, 0
      %s204 = sadd.s32 %s203, 1
      %s205 = scalar_select %p202, %s203, %s204
      %p208 = pneg %p202
      %p209 = scmp.eq.s32.totalorder %s28, 3
      %p210 = por %p208, %p209
      %p211 = scmp.ne.s32.totalorder %s203, %s206
      %p212 = scmp.eq.s32.totalorder %s28, 0
      %p213 = por %p211, %p212
      %p214 = scmp.ne.s32.totalorder %s203, %s206
      %p215 = scmp.eq.s32.totalorder %s33, 3
      %p216 = por %p214, %p215
      %p217 = scmp.ne.s32.totalorder %s206, %s207
      %p218 = scmp.eq.s32.totalorder %s33, 0
      %p219 = por %p217, %p218
      %p220 = scmp.ne.s32.totalorder %s206, %s207
      %p221 = scmp.eq.s32.totalorder %s34, 3
      %p222 = por %p220, %p221
      %p224 = scmp.ne.s32.totalorder %s207, %s223
      %p225 = scmp.eq.s32.totalorder %s34, 0
      %p226 = por %p224, %p225
      %s227 = ssub.s32 %s35, %s54
      %s228 = ssub.s32 %s36, %s50
      %s229 = sor.u32 %s227, %s228
      %p230 = scmp.eq.s32.totalorder %s229, 0
      %s232 = sadd.s32 %s231, 1
      %s233 = scalar_select %p230, %s231, %s232
      %p236 = pneg %p230
      %p237 = scmp.eq.s32.totalorder %s28, 3
      %p238 = por %p236, %p237
      %p239 = scmp.ne.s32.totalorder %s231, %s234
      %p240 = scmp.eq.s32.totalorder %s28, 0
      %p241 = por %p239, %p240
      %p242 = scmp.ne.s32.totalorder %s231, %s234
      %p243 = scmp.eq.s32.totalorder %s33, 3
      %p244 = por %p242, %p243
      %p245 = scmp.ne.s32.totalorder %s234, %s235
      %p246 = scmp.eq.s32.totalorder %s33, 0
      %p247 = por %p245, %p246
      %p248 = scmp.ne.s32.totalorder %s234, %s235
      %p249 = scmp.eq.s32.totalorder %s34, 3
      %p250 = por %p248, %p249
      %p252 = scmp.ne.s32.totalorder %s235, %s251
      %p253 = scmp.eq.s32.totalorder %s34, 0
      %p254 = por %p252, %p253
      %p255 = scmp.le.s32.totalorder 1, %s28
      %p256 = scmp.lt.s32.totalorder %s28, 5
      %p257 = pnand %p255, %p256
      %p258 = pneg %p257
      // Predicated region
      $region9: #{tpu_custom_call.1} parent=5 // pred_check
        _
      $region10: #{tpu_custom_call.1} parent=5 // pred_check_branch
        %260 = sbr.rel (%p257) target = $region12
      $region11: #{tpu_custom_call.1} parent=5 // pred_region
        %s261 = ssub.s32 %s28, 1
      $region12: #{tpu_custom_call.1} parent=5 // pred_fallthru
        _
      %p262 = scmp.lt.s32.totalorder %s28, 4
      // Predicated region
      $region13: #{tpu_custom_call.1} parent=5 // pred_check
        %p263 = pneg %p262
      $region14: #{tpu_custom_call.1} parent=5 // pred_check_branch
        %265 = sbr.rel (%p263) target = $region16
      $region15: #{tpu_custom_call.1} parent=5 // pred_region
        // Predicated region
        $region17: #{tpu_custom_call.1} parent=15 // pred_check
          %p266 = pneg %p69
        $region18: #{tpu_custom_call.1} parent=15 // pred_check_branch
          %268 = sbr.rel (%p266) target = $region20
        $region19: #{tpu_custom_call.1} parent=15 // pred_region
          %s269 = sand.u32 %s59, 1
          %s270 = scalar_lea.sflag [#allocation6], %s269
          %s271 = sand.u32 %s59, 1
          %s272 = smul.addr %s271, 8
          %s273 = scalar_lea.vmem [#allocation5], %s272
          %s274 = smul.u32 2, %s36
          %s276 = ssub.s32 128, 128
          %277 = vsyncadd %s270, %s276
          %s278 = smul.addr %s35, 4
          %s279 = sadd.s32 %s274, %s278
          %s280 = smul.addr %s279, 64
          %s281 = scalar_lea.hbm %s0, %s280
          %s282 = sshll.u32 %s273, 4
          %s283 = int_to_ptr.vmem [resolvable:$true] %s282
          %288 = dma.hbm_to_vmem [thread:$0]  %s281, 128, %s283, %s270, 64, 64, 4
        $region20: #{tpu_custom_call.1} parent=15 // pred_fallthru
          _
        // Predicated region
        $region21: #{tpu_custom_call.1} parent=15 // pred_check
          %p289 = pneg %p99
        $region22: #{tpu_custom_call.1} parent=15 // pred_check_branch
          %291 = sbr.rel (%p289) target = $region24
        $region23: #{tpu_custom_call.1} parent=15 // pred_region
          %s292 = sand.u32 %s28, 1
          %s293 = scalar_lea.sflag [#allocation9], %s292
          %s294 = sand.u32 %s89, 1
          %s295 = smul.addr %s294, 8
          %s296 = scalar_lea.vmem [#allocation8], %s295
          %s297 = smul.u32 2, %s36
          %s299 = ssub.s32 128, 128
          %300 = vsyncadd %s293, %s299
          %s301 = sadd.s32 %s37, %s297
          %s302 = smul.addr %s35, 4
          %s303 = sadd.s32 %s301, %s302
          %s304 = smul.addr %s303, 64
          %s305 = scalar_lea.hbm %s1, %s304
          %s306 = sshll.u32 %s296, 4
          %s307 = int_to_ptr.vmem [resolvable:$true] %s306
          %312 = dma.hbm_to_vmem [thread:$0]  %s305, 128, %s307, %s293, 64, 64, 4
        $region24: #{tpu_custom_call.1} parent=15 // pred_fallthru
          _
        // Predicated region
        $region25: #{tpu_custom_call.1} parent=15 // pred_check
          %p313 = pneg %p129
        $region26: #{tpu_custom_call.1} parent=15 // pred_check_branch
          %315 = sbr.rel (%p313) target = $region28
        $region27: #{tpu_custom_call.1} parent=15 // pred_region
          %s316 = sand.u32 %s28, 1
          %s317 = scalar_lea.sflag [#allocation9], %s316
          %s318 = sand.u32 %s119, 1
          %s319 = smul.addr %s318, 8
          %s320 = scalar_lea.vmem [#allocation10], %s319
          %s321 = smul.u32 2, %s36
          %s323 = ssub.s32 128, 128
          %324 = vsyncadd %s317, %s323
          %s325 = sadd.s32 %s37, %s321
          %s326 = smul.addr %s35, 4
          %s327 = sadd.s32 %s325, %s326
          %s328 = smul.addr %s327, 64
          %s329 = scalar_lea.hbm %s2, %s328
          %s330 = sshll.u32 %s320, 4
          %s331 = int_to_ptr.vmem [resolvable:$true] %s330
          %336 = dma.hbm_to_vmem [thread:$0]  %s329, 128, %s331, %s317, 64, 64, 4
        $region28: #{tpu_custom_call.1} parent=15 // pred_fallthru
          _
        // Predicated region
        $region29: #{tpu_custom_call.1} parent=15 // pred_check
          %p337 = pneg %p159
        $region30: #{tpu_custom_call.1} parent=15 // pred_check_branch
          %339 = sbr.rel (%p337) target = $region32
        $region31: #{tpu_custom_call.1} parent=15 // pred_region
          %s340 = sand.u32 %s28, 1
          %s341 = scalar_lea.sflag [#allocation12], %s340
          %s342 = sand.u32 %s149, 1
          %s343 = smul.addr %s342, 8
          %s344 = scalar_lea.vmem [#allocation11], %s343
          %s345 = smul.u32 2, %s36
          %s347 = ssub.s32 128, 128
          %348 = vsyncadd %s341, %s347
          %s349 = sadd.s32 %s37, %s345
          %s350 = smul.addr %s35, 4
          %s351 = sadd.s32 %s349, %s350
          %s352 = smul.addr %s351, 64
          %s353 = scalar_lea.hbm %s3, %s352
          %s354 = sshll.u32 %s344, 4
          %s355 = int_to_ptr.vmem [resolvable:$true] %s354
          %360 = dma.hbm_to_vmem [thread:$0]  %s353, 128, %s355, %s341, 64, 64, 4
        $region32: #{tpu_custom_call.1} parent=15 // pred_fallthru
          _
        // Predicated region
        $region33: #{tpu_custom_call.1} parent=15 // pred_check
          %p361 = pneg %p185
        $region34: #{tpu_custom_call.1} parent=15 // pred_check_branch
          %363 = sbr.rel (%p361) target = $region36
        $region35: #{tpu_custom_call.1} parent=15 // pred_region
          %s364 = sand.u32 %s28, 1
          %s365 = scalar_lea.sflag [#allocation12], %s364
          %s366 = sand.u32 %s175, 1
          %s367 = smul.addr %s366, 8
          %s368 = scalar_lea.vmem [#allocation13], %s367
          %s369 = smul.u32 2, %s36
          %s371 = ssub.s32 128, 128
          %372 = vsyncadd %s365, %s371
          %s373 = smul.addr %s369, 64
          %s374 = scalar_lea.hbm %s4, %s373
          %s375 = sshll.u32 %s368, 4
          %s376 = int_to_ptr.vmem [resolvable:$true] %s375
          %381 = dma.hbm_to_vmem [thread:$0]  %s374, 128, %s376, %s365, 64, 64, 4
        $region36: #{tpu_custom_call.1} parent=15 // pred_fallthru
          _
      $region16: #{tpu_custom_call.1} parent=5 // pred_fallthru
        _
      %p382 = scmp.le.s32.totalorder 1, %s28
      %p383 = scmp.lt.s32.totalorder %s28, 5
      %p384 = pnand %p382, %p383
      %p385 = pneg %p384
      // Predicated region
      $region37: #{tpu_custom_call.1} parent=5 // pred_check
        _
      $region38: #{tpu_custom_call.1} parent=5 // pred_check_branch
        %387 = sbr.rel (%p384) target = $region40
      $region39: #{tpu_custom_call.1} parent=5 // pred_region
        %s388 = ssub.s32 %s28, 1
        %s389 = sand.u32 %s62, 1
        %s390 = scalar_lea.sflag [#allocation6], %s389
        %s391 = sand.u32 %s62, 1
        %s392 = smul.addr %s391, 8
        %s393 = scalar_lea.vmem [#allocation5], %s392
        // Predicated region
        $region41: #{tpu_custom_call.1} parent=39 // pred_check
          %p394 = pneg %p75
        $region42: #{tpu_custom_call.1} parent=39 // pred_check_branch
          %396 = sbr.rel (%p394) target = $region44
        $region43: #{tpu_custom_call.1} parent=39 // pred_region
          %397 = dma.done %s390, 128
        $region44: #{tpu_custom_call.1} parent=39 // pred_fallthru
          _
        %s398 = sand.u32 %s33, 1
        %s399 = scalar_lea.sflag [#allocation9], %s398
        %s400 = sand.u32 %s92, 1
        %s401 = smul.addr %s400, 8
        %s402 = scalar_lea.vmem [#allocation8], %s401
        // Predicated region
        $region45: #{tpu_custom_call.1} parent=39 // pred_check
          %p403 = pneg %p105
        $region46: #{tpu_custom_call.1} parent=39 // pred_check_branch
          %405 = sbr.rel (%p403) target = $region48
        $region47: #{tpu_custom_call.1} parent=39 // pred_region
          %406 = dma.done %s399, 128
        $region48: #{tpu_custom_call.1} parent=39 // pred_fallthru
          _
        %s407 = sand.u32 %s33, 1
        %s408 = scalar_lea.sflag [#allocation9], %s407
        %s409 = sand.u32 %s122, 1
        %s410 = smul.addr %s409, 8
        %s411 = scalar_lea.vmem [#allocation10], %s410
        // Predicated region
        $region49: #{tpu_custom_call.1} parent=39 // pred_check
          %p412 = pneg %p135
        $region50: #{tpu_custom_call.1} parent=39 // pred_check_branch
          %414 = sbr.rel (%p412) target = $region52
        $region51: #{tpu_custom_call.1} parent=39 // pred_region
          %415 = dma.done %s408, 128
        $region52: #{tpu_custom_call.1} parent=39 // pred_fallthru
          _
        %s416 = sand.u32 %s33, 1
        %s417 = scalar_lea.sflag [#allocation12], %s416
        %s418 = sand.u32 %s152, 1
        %s419 = smul.addr %s418, 8
        %s420 = scalar_lea.vmem [#allocation11], %s419
        // Predicated region
        $region53: #{tpu_custom_call.1} parent=39 // pred_check
          %p421 = pneg %p165
        $region54: #{tpu_custom_call.1} parent=39 // pred_check_branch
          %423 = sbr.rel (%p421) target = $region56
        $region55: #{tpu_custom_call.1} parent=39 // pred_region
          %424 = dma.done %s417, 128
        $region56: #{tpu_custom_call.1} parent=39 // pred_fallthru
          _
        %s425 = sand.u32 %s33, 1
        %s426 = scalar_lea.sflag [#allocation12], %s425
        %s427 = sand.u32 %s178, 1
        %s428 = smul.addr %s427, 8
        %s429 = scalar_lea.vmem [#allocation13], %s428
        // Predicated region
        $region57: #{tpu_custom_call.1} parent=39 // pred_check
          %p430 = pneg %p191
        $region58: #{tpu_custom_call.1} parent=39 // pred_check_branch
          %432 = sbr.rel (%p430) target = $region60
        $region59: #{tpu_custom_call.1} parent=39 // pred_region
          %433 = dma.done %s426, 128
        $region60: #{tpu_custom_call.1} parent=39 // pred_fallthru
          _
        %s434 = sand.u32 %s62, 1
        %s435 = scalar_lea.sflag [#allocation6], %s434
        %s436 = sand.u32 %s62, 1
        %s437 = smul.addr %s436, 8
        %s438 = scalar_lea.vmem [#allocation5], %s437
        %p439 = pneg %p75
        %p440 = pneg %p72
        %s441 = sand.u32 %s33, 1
        %s442 = scalar_lea.sflag [#allocation9], %s441
        %s443 = sand.u32 %s92, 1
        %s444 = smul.addr %s443, 8
        %s445 = scalar_lea.vmem [#allocation8], %s444
        %p446 = pneg %p105
        %p447 = pneg %p102
        %s448 = sand.u32 %s33, 1
        %s449 = scalar_lea.sflag [#allocation9], %s448
        %s450 = sand.u32 %s122, 1
        %s451 = smul.addr %s450, 8
        %s452 = scalar_lea.vmem [#allocation10], %s451
        %p453 = pneg %p135
        %p454 = pneg %p132
        %s455 = sand.u32 %s33, 1
        %s456 = scalar_lea.sflag [#allocation12], %s455
        %s457 = sand.u32 %s152, 1
        %s458 = smul.addr %s457, 8
        %s459 = scalar_lea.vmem [#allocation11], %s458
        %p460 = pneg %p165
        %p461 = pneg %p162
        %s462 = sand.u32 %s33, 1
        %s463 = scalar_lea.sflag [#allocation12], %s462
        %s464 = sand.u32 %s178, 1
        %s465 = smul.addr %s464, 8
        %s466 = scalar_lea.vmem [#allocation13], %s465
        %p467 = pneg %p191
        %p468 = pneg %p188
        %p469 = pneg %p219
        %p470 = pneg %p216
        %s471 = sand.u32 %s206, 1
        %s472 = scalar_lea.sflag [#allocation7], %s471
        %s473 = sand.u32 %s206, 1
        %s474 = smul.addr %s473, 8
        %s475 = scalar_lea.vmem [#allocation14], %s474
        %p476 = pneg %p247
        %p477 = pneg %p244
        %s478 = sand.u32 %s234, 1
        %s479 = scalar_lea.sflag [#allocation16], %s478
        %s480 = sand.u32 %s234, 1
        %s481 = smul.addr %s480, 8
        %s482 = scalar_lea.vmem [#allocation15], %s481
        %s483 = smul.u32 2, %s39
        %s484 = smul.u32 2, %s39
        %s485 = smul.u32 2, %s39
        %s486 = smul.u32 2, %s39
        %s487 = smul.u32 2, %s39
        %s488 = smul.u32 2, %s39
        %p490 = scmp.eq.s32.totalorder %s40, 0
        // Predicated region
        $region61: #{tpu_custom_call.1} parent=39 // pred_check
          %p491 = pneg %p490
        $region62: #{tpu_custom_call.1} parent=39 // pred_check_branch
          %493 = sbr.rel (%p491) target = $region64
        $region63: #{tpu_custom_call.1} parent=39 // pred_region
          %vm494 = vcmask 7168
          %495 = vst.msk [vmem:[#allocation2] sm:$0xff] %vm494, -1e+30
          %496 = vst.msk [vmem:[#allocation2 + $0x8] sm:$0xff] %vm494, -1e+30
          %497 = vst.msk [vmem:[#allocation3] sm:$0xff] %vm494, 0.0
          %498 = vst.msk [vmem:[#allocation3 + $0x8] sm:$0xff] %vm494, 0.0
          %vm499 = vcmask 64512
          %500 = vst.msk [vmem:[#allocation4] sm:$0xff] %vm499, 0.0
          %501 = vst.msk [vmem:[#allocation4 + $0x8] sm:$0xff] %vm499, 0.0
        $region64: #{tpu_custom_call.1} parent=39 // pred_fallthru
          _
        %v502 = vld [vmem:[%s393] sm:$0xf]
        %v503 = vld [vmem:[%s393 + $0x4] sm:$0xf]
        %v504 = vld [vmem:[%s402] sm:$0xf]
        %v505 = vld [vmem:[%s402 + $0x4] sm:$0xf]
        %v506 = vld [vmem:[%s411] sm:$0xf]
        %v507 = vld [vmem:[%s411 + $0x4] sm:$0xf]
        %v508 = vld [vmem:[%s420] sm:$0xf]
        %v509 = vld [vmem:[%s420 + $0x4] sm:$0xf]
        %v510 = vunpack.c.l.bf16 %v508
        %v511 = vunpack.c.l.bf16 %v509
        %vm512 = vcmask 64512
        %v514 = vsel %vm512, %v502, 0
        %v517 = vsel %vm512, %v504, 0
        %519 = vmatprep.subr.bf16.mxu0 0
        %520 = vmatpush1.bf16.xpose.msra.mxu0 0
        %521 = vmatprep.subr.bf16.mxu0 0
        %522 = vmatpush1.bf16.xpose.msra.mxu0 0
        %523 = vmatprep.subr.bf16.mxu0 0
        %524 = vmatpush1.bf16.xpose.msra.mxu0 0
        %525 = vmatprep.subr.bf16.mxu0 0
        %526 = vmatpush1.bf16.xpose.msra.mxu0 0
        %527 = vmatprep.subr.bf16.mxu0 0
        %528 = vmatpush1.bf16.xpose.msra.mxu0 0
        %529 = vmatprep.subr.bf16.mxu0 0
        %530 = vmatpush1.bf16.xpose.msra.mxu0 0
        %531 = vmatprep.subr.bf16.mxu0 0
        %532 = vmatpush1.bf16.xpose.msra.mxu0 0
        %533 = vmatprep.subr.bf16.mxu0 0
        %534 = vmatpush1.bf16.xpose.msra.mxu0 %v517
        %535 = vmatprep.subr.bf16.mxu0 0
        %536 = vmatpush2.bf16.xpose.msra.mxu0 0
        %537 = vmatprep.subr.bf16.mxu0 0
        %538 = vmatpush2.bf16.xpose.msra.mxu0 0
        %539 = vmatprep.subr.bf16.mxu0 0
        %540 = vmatpush2.bf16.xpose.msra.mxu0 0
        %541 = vmatprep.subr.bf16.mxu0 0
        %542 = vmatpush2.bf16.xpose.msra.mxu0 0
        %543 = vmatprep.subr.bf16.mxu0 0
        %544 = vmatpush2.bf16.xpose.msra.mxu0 0
        %545 = vmatprep.subr.bf16.mxu0 0
        %546 = vmatpush2.bf16.xpose.msra.mxu0 0
        %547 = vmatprep.subr.bf16.mxu0 0
        %548 = vmatpush2.bf16.xpose.msra.mxu0 0
        %549 = vmatprep.subr.bf16.mxu0 0
        %550 = vmatpush2.bf16.xpose.msra.mxu0 0
        %551 = vmatprep.mubr.bf16.mxu0 0
        %552 = vmatmul.mubr.bf16.gmra.mxu0 %v514
        %v553 = vpop.f32.mrf.mxu0
        %v554 = vadd.f32 %v510, %v553
        %v555 = vpop.f32.mrf.mxu0
        %v556 = vpop.f32.mrf.mxu0
        %v557 = vpop.f32.mrf.mxu0
        %558 = vdwg.mxu0
        %v560 = vsel %vm512, %v503, 0
        %v563 = vsel %vm512, %v505, 0
        %565 = vmatprep.subr.bf16.mxu0 0
        %566 = vmatpush1.bf16.xpose.msra.mxu0 0
        %567 = vmatprep.subr.bf16.mxu0 0
        %568 = vmatpush1.bf16.xpose.msra.mxu0 0
        %569 = vmatprep.subr.bf16.mxu0 0
        %570 = vmatpush1.bf16.xpose.msra.mxu0 0
        %571 = vmatprep.subr.bf16.mxu0 0
        %572 = vmatpush1.bf16.xpose.msra.mxu0 0
        %573 = vmatprep.subr.bf16.mxu0 0
        %574 = vmatpush1.bf16.xpose.msra.mxu0 0
        %575 = vmatprep.subr.bf16.mxu0 0
        %576 = vmatpush1.bf16.xpose.msra.mxu0 0
        %577 = vmatprep.subr.bf16.mxu0 0
        %578 = vmatpush1.bf16.xpose.msra.mxu0 0
        %579 = vmatprep.subr.bf16.mxu0 0
        %580 = vmatpush1.bf16.xpose.msra.mxu0 %v563
        %581 = vmatprep.subr.bf16.mxu0 0
        %582 = vmatpush2.bf16.xpose.msra.mxu0 0
        %583 = vmatprep.subr.bf16.mxu0 0
        %584 = vmatpush2.bf16.xpose.msra.mxu0 0
        %585 = vmatprep.subr.bf16.mxu0 0
        %586 = vmatpush2.bf16.xpose.msra.mxu0 0
        %587 = vmatprep.subr.bf16.mxu0 0
        %588 = vmatpush2.bf16.xpose.msra.mxu0 0
        %589 = vmatprep.subr.bf16.mxu0 0
        %590 = vmatpush2.bf16.xpose.msra.mxu0 0
        %591 = vmatprep.subr.bf16.mxu0 0
        %592 = vmatpush2.bf16.xpose.msra.mxu0 0
        %593 = vmatprep.subr.bf16.mxu0 0
        %594 = vmatpush2.bf16.xpose.msra.mxu0 0
        %595 = vmatprep.subr.bf16.mxu0 0
        %596 = vmatpush2.bf16.xpose.msra.mxu0 0
        %597 = vmatprep.mubr.bf16.mxu0 0
        %598 = vmatmul.mubr.bf16.gmra.mxu0 %v560
        %v599 = vpop.f32.mrf.mxu0
        %v600 = vadd.f32 %v511, %v599
        %v601 = vpop.f32.mrf.mxu0
        %v602 = vpop.f32.mrf.mxu0
        %v603 = vpop.f32.mrf.mxu0
        %604 = vdwg.mxu0
        %v605 = vld [vmem:[#allocation2] sm:$0xff]
        %v606 = vld [vmem:[#allocation2 + $0x8] sm:$0xff]
        %v607 = vld [vmem:[#allocation3] sm:$0xff]
        %v608 = vld [vmem:[#allocation3 + $0x8] sm:$0xff]
        %v609 = vsel %vm512, %v554, -inf
        %610 = vmax.xlane.f32.xlu0 %v609
        %v611 = vpop.xlane.xlu0 %610
        %v612 = vsel %vm512, %v600, -inf
        %613 = vmax.xlane.f32.xlu0 %v612
        %v614 = vpop.xlane.xlu0 %613
        %v615 = vmax.f32 %v605, %v611
        %v616 = vmax.f32 %v606, %v614
        %v617 = vsub.f32 %v605, %v615
        %v618 = vsub.f32 %v606, %v616
        %v619 = vmul.f32 %v617, 1.442695
        %v620 = vpow.pop %v619
        %v621 = vmul.f32 %v618, 1.442695
        %v622 = vpow.pop %v621
        %624 = vset.pattern.permute.xlu0 0
        %625 = vperm.xlu0 %624, %v615
        %v626 = vpop.permute.xlu0 %625
        %629 = vset.pattern.permute.xlu0 0
        %630 = vperm.xlu0 %629, %v616
        %v631 = vpop.permute.xlu0 %630
        %v633 = vsub.f32 %v554, %v626
        %v634 = vsub.f32 %v600, %v631
        %v635 = vmul.f32 %v633, 1.442695
        %v636 = vpow.pop %v635
        %v637 = vmul.f32 %v634, 1.442695
        %v638 = vpow.pop %v637
        %v639 = vmul.f32 %v620, %v607
        %v640 = vmul.f32 %v622, %v608
        %v641 = vsel %vm512, %v636, 0.0
        %642 = vadd.xlane.f32.xlu0 %v641
        %v643 = vpop.xlane.xlu0 %642
        %v644 = vsel %vm512, %v638, 0.0
        %645 = vadd.xlane.f32.xlu0 %v644
        %v646 = vpop.xlane.xlu0 %645
        %v647 = vadd.f32 %v639, %v643
        %v648 = vadd.f32 %v640, %v646
        %v649 = vld [vmem:[#allocation4] sm:$0xff]
        %v650 = vld [vmem:[#allocation4 + $0x8] sm:$0xff]
        %652 = vset.pattern.permute.xlu0 0
        %653 = vperm.xlu0 %652, %v620
        %v654 = vpop.permute.xlu0 %653
        %657 = vset.pattern.permute.xlu0 0
        %658 = vperm.xlu0 %657, %v622
        %v659 = vpop.permute.xlu0 %658
        %v661 = vmul.f32 %v654, %v649
        %v662 = vmul.f32 %v659, %v650
        %v663 = vpack.c.bf16 %v636, %v636
        %v664 = vpack.c.bf16 %v638, %v638
        %v666 = vsel %vm512, %v663, 0
        %vm668 = vcmask 1043456
        %v670 = vsel %vm668, %v506, 0
        %672 = vmatprep.subr.bf16.mxu0 0
        %673 = vmatpush1.bf16.msra.mxu0 0
        %674 = vmatprep.subr.bf16.mxu0 0
        %675 = vmatpush1.bf16.msra.mxu0 0
        %676 = vmatprep.subr.bf16.mxu0 0
        %677 = vmatpush1.bf16.msra.mxu0 0
        %678 = vmatprep.subr.bf16.mxu0 0
        %679 = vmatpush1.bf16.msra.mxu0 0
        %680 = vmatprep.subr.bf16.mxu0 0
        %681 = vmatpush1.bf16.msra.mxu0 0
        %682 = vmatprep.subr.bf16.mxu0 0
        %683 = vmatpush1.bf16.msra.mxu0 0
        %684 = vmatprep.subr.bf16.mxu0 0
        %685 = vmatpush1.bf16.msra.mxu0 0
        %686 = vmatprep.subr.bf16.mxu0 0
        %687 = vmatpush1.bf16.msra.mxu0 %v670
        %688 = vmatprep.subr.bf16.mxu0 0
        %689 = vmatpush2.bf16.msra.mxu0 0
        %690 = vmatprep.subr.bf16.mxu0 0
        %691 = vmatpush2.bf16.msra.mxu0 0
        %692 = vmatprep.subr.bf16.mxu0 0
        %693 = vmatpush2.bf16.msra.mxu0 0
        %694 = vmatprep.subr.bf16.mxu0 0
        %695 = vmatpush2.bf16.msra.mxu0 0
        %696 = vmatprep.subr.bf16.mxu0 0
        %697 = vmatpush2.bf16.msra.mxu0 0
        %698 = vmatprep.subr.bf16.mxu0 0
        %699 = vmatpush2.bf16.msra.mxu0 0
        %700 = vmatprep.subr.bf16.mxu0 0
        %701 = vmatpush2.bf16.msra.mxu0 0
        %702 = vmatprep.subr.bf16.mxu0 0
        %703 = vmatpush2.bf16.msra.mxu0 0
        %704 = vmatprep.mubr.bf16.mxu0 0
        %705 = vmatmul.mubr.bf16.gmra.mxu0 %v666
        %v706 = vpop.f32.mrf.mxu0
        %v707 = vadd.f32 0.0, %v706
        %v708 = vpop.f32.mrf.mxu0
        %v709 = vpop.f32.mrf.mxu0
        %v710 = vpop.f32.mrf.mxu0
        %711 = vdwg.mxu0
        %v713 = vsel %vm512, %v664, 0
        %v716 = vsel %vm668, %v507, 0
        %718 = vmatprep.subr.bf16.mxu0 0
        %719 = vmatpush1.bf16.msra.mxu0 0
        %720 = vmatprep.subr.bf16.mxu0 0
        %721 = vmatpush1.bf16.msra.mxu0 0
        %722 = vmatprep.subr.bf16.mxu0 0
        %723 = vmatpush1.bf16.msra.mxu0 0
        %724 = vmatprep.subr.bf16.mxu0 0
        %725 = vmatpush1.bf16.msra.mxu0 0
        %726 = vmatprep.subr.bf16.mxu0 0
        %727 = vmatpush1.bf16.msra.mxu0 0
        %728 = vmatprep.subr.bf16.mxu0 0
        %729 = vmatpush1.bf16.msra.mxu0 0
        %730 = vmatprep.subr.bf16.mxu0 0
        %731 = vmatpush1.bf16.msra.mxu0 0
        %732 = vmatprep.subr.bf16.mxu0 0
        %733 = vmatpush1.bf16.msra.mxu0 %v716
        %734 = vmatprep.subr.bf16.mxu0 0
        %735 = vmatpush2.bf16.msra.mxu0 0
        %736 = vmatprep.subr.bf16.mxu0 0
        %737 = vmatpush2.bf16.msra.mxu0 0
        %738 = vmatprep.subr.bf16.mxu0 0
        %739 = vmatpush2.bf16.msra.mxu0 0
        %740 = vmatprep.subr.bf16.mxu0 0
        %741 = vmatpush2.bf16.msra.mxu0 0
        %742 = vmatprep.subr.bf16.mxu0 0
        %743 = vmatpush2.bf16.msra.mxu0 0
        %744 = vmatprep.subr.bf16.mxu0 0
        %745 = vmatpush2.bf16.msra.mxu0 0
        %746 = vmatprep.subr.bf16.mxu0 0
        %747 = vmatpush2.bf16.msra.mxu0 0
        %748 = vmatprep.subr.bf16.mxu0 0
        %749 = vmatpush2.bf16.msra.mxu0 0
        %750 = vmatprep.mubr.bf16.mxu0 0
        %751 = vmatmul.mubr.bf16.gmra.mxu0 %v713
        %v752 = vpop.f32.mrf.mxu0
        %v753 = vadd.f32 0.0, %v752
        %v754 = vpop.f32.mrf.mxu0
        %v755 = vpop.f32.mrf.mxu0
        %v756 = vpop.f32.mrf.mxu0
        %757 = vdwg.mxu0
        %v758 = vadd.f32 %v661, %v707
        %v759 = vadd.f32 %v662, %v753
        %760 = vst.msk [vmem:[#allocation4] sm:$0xff] %vm512, %v758
        %761 = vst.msk [vmem:[#allocation4 + $0x8] sm:$0xff] %vm512, %v759
        %vm762 = vcmask 7168
        %763 = vst.msk [vmem:[#allocation2] sm:$0xff] %vm762, %v615
        %764 = vst.msk [vmem:[#allocation2 + $0x8] sm:$0xff] %vm762, %v616
        %765 = vst.msk [vmem:[#allocation3] sm:$0xff] %vm762, %v647
        %766 = vst.msk [vmem:[#allocation3 + $0x8] sm:$0xff] %vm762, %v648
        // Predicated region
        $region65: #{tpu_custom_call.1} parent=39 // pred_check
          %p767 = pneg %p490
        $region66: #{tpu_custom_call.1} parent=39 // pred_check_branch
          %769 = sbr.rel (%p767) target = $region68
        $region67: #{tpu_custom_call.1} parent=39 // pred_region
          %v770 = vld [vmem:[#allocation3] sm:$0xff]
          %v771 = vld [vmem:[#allocation3 + $0x8] sm:$0xff]
          %v772 = vrcp.pop %v770
          %v773 = vrcp.pop %v771
          %v774 = vld [vmem:[#allocation4] sm:$0xff]
          %v775 = vld [vmem:[#allocation4 + $0x8] sm:$0xff]
          %777 = vset.pattern.permute.xlu0 0
          %778 = vperm.xlu0 %777, %v772
          %v779 = vpop.permute.xlu0 %778
          %782 = vset.pattern.permute.xlu0 0
          %783 = vperm.xlu0 %782, %v773
          %v784 = vpop.permute.xlu0 %783
          %v786 = vmul.f32 %v774, %v779
          %v787 = vmul.f32 %v775, %v784
          %v788 = vpack.c.bf16 %v786, %v786
          %v789 = vld [vmem:[%s429] sm:$0xf]
          %v790 = vpack.c.bf16 %v787, %v787
          %s791 = scalar_lea.vmem %s429, 4 [#allocation13]
          %v792 = vld [vmem:[%s791] sm:$0xf]
          %v794 = vsel %vm512, %v790, 0
          %v797 = vsel %vm668, %v792, 0
          %799 = vmatprep.subr.bf16.mxu0 0
          %800 = vmatpush1.bf16.msra.mxu0 0
          %801 = vmatprep.subr.bf16.mxu0 0
          %802 = vmatpush1.bf16.msra.mxu0 0
          %803 = vmatprep.subr.bf16.mxu0 0
          %804 = vmatpush1.bf16.msra.mxu0 0
          %805 = vmatprep.subr.bf16.mxu0 0
          %806 = vmatpush1.bf16.msra.mxu0 0
          %807 = vmatprep.subr.bf16.mxu0 0
          %808 = vmatpush1.bf16.msra.mxu0 0
          %809 = vmatprep.subr.bf16.mxu0 0
          %810 = vmatpush1.bf16.msra.mxu0 0
          %811 = vmatprep.subr.bf16.mxu0 0
          %812 = vmatpush1.bf16.msra.mxu0 0
          %813 = vmatprep.subr.bf16.mxu0 0
          %814 = vmatpush1.bf16.msra.mxu0 %v797
          %815 = vmatprep.subr.bf16.mxu0 0
          %816 = vmatpush2.bf16.msra.mxu0 0
          %817 = vmatprep.subr.bf16.mxu0 0
          %818 = vmatpush2.bf16.msra.mxu0 0
          %819 = vmatprep.subr.bf16.mxu0 0
          %820 = vmatpush2.bf16.msra.mxu0 0
          %821 = vmatprep.subr.bf16.mxu0 0
          %822 = vmatpush2.bf16.msra.mxu0 0
          %823 = vmatprep.subr.bf16.mxu0 0
          %824 = vmatpush2.bf16.msra.mxu0 0
          %825 = vmatprep.subr.bf16.mxu0 0
          %826 = vmatpush2.bf16.msra.mxu0 0
          %827 = vmatprep.subr.bf16.mxu0 0
          %828 = vmatpush2.bf16.msra.mxu0 0
          %829 = vmatprep.subr.bf16.mxu0 0
          %830 = vmatpush2.bf16.msra.mxu0 0
          %831 = vmatprep.mubr.bf16.mxu0 0
          %832 = vmatmul.mubr.bf16.gmra.mxu0 %v794
          %v833 = vpop.f32.mrf.mxu0
          %v834 = vadd.f32 0.0, %v833
          %v835 = vpop.f32.mrf.mxu0
          %v836 = vpop.f32.mrf.mxu0
          %v837 = vpop.f32.mrf.mxu0
          %838 = vdwg.mxu0
          %v840 = vsel %vm512, %v788, 0
          %v843 = vsel %vm668, %v789, 0
          %845 = vmatprep.subr.bf16.mxu0 0
          %846 = vmatpush1.bf16.msra.mxu0 0
          %847 = vmatprep.subr.bf16.mxu0 0
          %848 = vmatpush1.bf16.msra.mxu0 0
          %849 = vmatprep.subr.bf16.mxu0 0
          %850 = vmatpush1.bf16.msra.mxu0 0
          %851 = vmatprep.subr.bf16.mxu0 0
          %852 = vmatpush1.bf16.msra.mxu0 0
          %853 = vmatprep.subr.bf16.mxu0 0
          %854 = vmatpush1.bf16.msra.mxu0 0
          %855 = vmatprep.subr.bf16.mxu0 0
          %856 = vmatpush1.bf16.msra.mxu0 0
          %857 = vmatprep.subr.bf16.mxu0 0
          %858 = vmatpush1.bf16.msra.mxu0 0
          %859 = vmatprep.subr.bf16.mxu0 0
          %860 = vmatpush1.bf16.msra.mxu0 %v843
          %861 = vmatprep.subr.bf16.mxu0 0
          %862 = vmatpush2.bf16.msra.mxu0 0
          %863 = vmatprep.subr.bf16.mxu0 0
          %864 = vmatpush2.bf16.msra.mxu0 0
          %865 = vmatprep.subr.bf16.mxu0 0
          %866 = vmatpush2.bf16.msra.mxu0 0
          %867 = vmatprep.subr.bf16.mxu0 0
          %868 = vmatpush2.bf16.msra.mxu0 0
          %869 = vmatprep.subr.bf16.mxu0 0
          %870 = vmatpush2.bf16.msra.mxu0 0
          %871 = vmatprep.subr.bf16.mxu0 0
          %872 = vmatpush2.bf16.msra.mxu0 0
          %873 = vmatprep.subr.bf16.mxu0 0
          %874 = vmatpush2.bf16.msra.mxu0 0
          %875 = vmatprep.subr.bf16.mxu0 0
          %876 = vmatpush2.bf16.msra.mxu0 0
          %877 = vmatprep.mubr.bf16.mxu0 0
          %878 = vmatmul.mubr.bf16.gmra.mxu0 %v840
          %v879 = vpop.f32.mrf.mxu0
          %v880 = vadd.f32 %v834, %v879
          %v881 = vpop.f32.mrf.mxu0
          %v882 = vpop.f32.mrf.mxu0
          %v883 = vpop.f32.mrf.mxu0
          %884 = vdwg.mxu0
          %vm885 = vcmask 261120
          %886 = vst.msk [vmem:[%s475] sm:$0xff] %vm885, %v880
          %v887 = vmul.f32 %v636, %v779
          %v888 = vmul.f32 %v638, %v784
          %v889 = vpack.c.bf16 %v887, %v887
          %v890 = vpack.c.bf16 %v888, %v888
          %vm891 = vcmask 60416
          %892 = vst.msk [vmem:[%s482] sm:$0xf] %vm891, %v889
          %893 = vst.msk [vmem:[%s482 + $0x4] sm:$0xf] %vm891, %v890
        $region68: #{tpu_custom_call.1} parent=39 // pred_fallthru
          _
        %s894 = sand.u32 %s206, 1
        %s895 = scalar_lea.sflag [#allocation7], %s894
        %s896 = sand.u32 %s206, 1
        %s897 = smul.addr %s896, 8
        %s898 = scalar_lea.vmem [#allocation14], %s897
        %s899 = sand.u32 %s234, 1
        %s900 = scalar_lea.sflag [#allocation16], %s899
        %s901 = sand.u32 %s234, 1
        %s902 = smul.addr %s901, 8
        %s903 = scalar_lea.vmem [#allocation15], %s902
        // Predicated region
        $region69: #{tpu_custom_call.1} parent=39 // pred_check
          %p904 = pneg %p216
        $region70: #{tpu_custom_call.1} parent=39 // pred_check_branch
          %906 = sbr.rel (%p904) target = $region72
        $region71: #{tpu_custom_call.1} parent=39 // pred_region
          %s908 = ssub.s32 128, 128
          %909 = vsyncadd %s895, %s908
          %s910 = smul.addr %s38, 2
          %s911 = sadd.s32 %s39, %s910
          %s912 = smul.addr %s911, 128
          %s913 = scalar_lea.hbm %s5, %s912
          %s915 = sshll.u32 %s898, 4
          %s916 = int_to_ptr.vmem [resolvable:$true] %s915
          %918 = dma.vmem_to_hbm [thread:$0]  %s916, 128, %s913, %s895
        $region72: #{tpu_custom_call.1} parent=39 // pred_fallthru
          _
        // Predicated region
        $region73: #{tpu_custom_call.1} parent=39 // pred_check
          %p919 = pneg %p244
        $region74: #{tpu_custom_call.1} parent=39 // pred_check_branch
          %921 = sbr.rel (%p919) target = $region76
        $region75: #{tpu_custom_call.1} parent=39 // pred_region
          %s922 = smul.u32 2, %s39
          %s924 = ssub.s32 128, 128
          %925 = vsyncadd %s900, %s924
          %s926 = smul.addr %s38, 4
          %s927 = sadd.s32 %s922, %s926
          %s928 = smul.addr %s927, 64
          %s929 = scalar_lea.hbm %s6, %s928
          %s930 = sshll.u32 %s903, 4
          %s931 = int_to_ptr.vmem [resolvable:$true] %s930
          %936 = dma.vmem_to_hbm [thread:$0]  %s931, 128, %s929, %s900, 64, 64, 4
        $region76: #{tpu_custom_call.1} parent=39 // pred_fallthru
          _
      $region40: #{tpu_custom_call.1} parent=5 // pred_fallthru
        _
      %p937 = scmp.le.s32.totalorder 2, %s28
      // Predicated region
      $region77: #{tpu_custom_call.1} parent=5 // pred_check
        %p938 = pneg %p937
      $region78: #{tpu_custom_call.1} parent=5 // pred_check_branch
        %940 = sbr.rel (%p938) target = $region80
      $region79: #{tpu_custom_call.1} parent=5 // pred_region
        %s941 = ssub.s32 %s28, 2
        // Predicated region
        $region81: #{tpu_custom_call.1} parent=79 // pred_check
          %p942 = pneg %p222
        $region82: #{tpu_custom_call.1} parent=79 // pred_check_branch
          %944 = sbr.rel (%p942) target = $region84
        $region83: #{tpu_custom_call.1} parent=79 // pred_region
          %s945 = sand.u32 %s207, 1
          %s946 = scalar_lea.sflag [#allocation7], %s945
          %s947 = sand.u32 %s207, 1
          %s948 = smul.addr %s947, 8
          %s949 = scalar_lea.vmem [#allocation14], %s948
          %950 = dma.done %s946, 128
        $region84: #{tpu_custom_call.1} parent=79 // pred_fallthru
          _
        // Predicated region
        $region85: #{tpu_custom_call.1} parent=79 // pred_check
          %p951 = pneg %p250
        $region86: #{tpu_custom_call.1} parent=79 // pred_check_branch
          %953 = sbr.rel (%p951) target = $region88
        $region87: #{tpu_custom_call.1} parent=79 // pred_region
          %s954 = sand.u32 %s235, 1
          %s955 = scalar_lea.sflag [#allocation16], %s954
          %s956 = sand.u32 %s235, 1
          %s957 = smul.addr %s956, 8
          %s958 = scalar_lea.vmem [#allocation15], %s957
          %959 = dma.done %s955, 128
        $region88: #{tpu_custom_call.1} parent=79 // pred_fallthru
          _
      $region80: #{tpu_custom_call.1} parent=5 // pred_fallthru
        _
    $region6: #{tpu_custom_call.1} parent=1 // loop_footer
      %s32 = sadd.s32 1, %s28
    $region7: #{tpu_custom_call.1} parent=1 // loop_footer_branch
      %27 = sbr.rel target = $region3
    $region8: #{tpu_custom_call.1} parent=1 // loop_exit
      _
    %960 = vsyncpa [#allocation6], 1
    %s961 = scalar_lea.sflag [#allocation6], 1
    %962 = vsyncpa %s961, 1
    %963 = vsyncpa [#allocation9], 1
    %s964 = scalar_lea.sflag [#allocation9], 1
    %965 = vsyncpa %s964, 1
    %966 = vsyncpa [#allocation12], 1
    %s967 = scalar_lea.sflag [#allocation12], 1
    %968 = vsyncpa %s967, 1
    %969 = vsyncpa [#allocation7], 1
    %s970 = scalar_lea.sflag [#allocation7], 1
    %971 = vsyncpa %s970, 1
    %972 = vsyncpa [#allocation16], 1
    %s973 = scalar_lea.sflag [#allocation16], 1
    %974 = vsyncpa %s973, 1

</llo_original>
